<compile_context>
chip_gen: v7x
topology: tpu7x:2x2x1
jax: 0.10.0
libtpu: 0.0.40
codegen_flags: <defaults>
</compile_context>

<pallas_src>
import math

import jax
import jax.numpy as jnp
from jax.experimental import pallas as pl
from jax.experimental.pallas import tpu as pltpu


def _gen2d_kernel(coeffs_ref, coord_ref, o_ref):
    # coeffs_ref: (2, Chp) f32 resident constants
    #   row 0: 1/dim_t (lane-padded with zeros past num_feat)
    #   row 1: phase   (0 for even features -> sin, pi/2 for odd -> cos)
    # coord_ref : (tn, 2)      lanes: col 0 = x, col 1 = y
    # o_ref     : (tn, 2*Chp)  [:, :Chp] <- y embedding, [:, Chp:] <- x embedding
    chp = coeffs_ref.shape[1]
    inv = coeffs_ref[0:1, :]                 # (1, Chp)
    ph = coeffs_ref[1:2, :]                  # (1, Chp)
    cx = coord_ref[:, 0:1]                   # (tn, 1)
    cy = coord_ref[:, 1:2]                   # (tn, 1)
    # One fused mul+add+sin per output element; cos(t) = sin(t + pi/2).
    o_ref[:, :chp] = jnp.sin(cy * inv + ph).astype(o_ref.dtype)
    o_ref[:, chp:] = jnp.sin(cx * inv + ph).astype(o_ref.dtype)


def gen_2d_embedding_from_vector(coord, width=256, temperature=10000,
                                 out_dtype=jnp.float32):
    """Pallas equivalent of Gen_2D_embedding_from_vector.forward.

    coord: (B, N, D) with D >= 2 (x = coord[..., 0], y = coord[..., 1]).
    Returns: (B, N, 2*(width//2)) in `out_dtype` (float32 by default), matching
    the PyTorch output layout exactly for even `width`.
    """
    B, N, D = coord.shape
    assert D >= 2, "coord must carry at least (x, y) in its last dimension"
    num_feat = width // 2
    assert num_feat % 2 == 0, "width//2 must be even (same constraint as torch.stack in the reference)"

    coord2 = coord.astype(jnp.float32)[..., :2].reshape(B * N, 2)   # (R, 2)
    R = B * N

    # --- per-channel constants (tiny, trace-time) ----------------------------
    j = jnp.arange(num_feat, dtype=jnp.float32)
    dim_t = jnp.float32(temperature) ** (2.0 * (j // 2.0) / jnp.float32(num_feat))
    inv_half = 1.0 / dim_t                                            # (num_feat,)
    phase_half = (jnp.arange(num_feat) % 2).astype(jnp.float32) * jnp.float32(math.pi / 2)

    # Lane-pad half-channel count to a multiple of 128 so both halves store as
    # unmasked full-lane vst (width=256 -> Chp = 128, no padding).
    Chp = max(128, ((num_feat + 127) // 128) * 128)
    pad = Chp - num_feat
    if pad:
        inv_half = jnp.pad(inv_half, (0, pad))        # padded lanes: sin(0)=0, sliced out below
        phase_half = jnp.pad(phase_half, (0, pad))
    coeffs = jnp.stack([inv_half, phase_half], axis=0)                # (2, Chp)
    Cout = 2 * Chp

    # --- row tiling (flattened B*N) ------------------------------------------
    cap = 2048
    if R <= 8:
        tn = R
    else:
        # at least 2 grid steps (v7x megacore), rows a multiple of 8 sublanes
        half_rows = (((R + 1) // 2) + 7) // 8 * 8
        tn = max(8, min(cap, half_rows))
    grid = (pl.cdiv(R, tn),)

    out = pl.pallas_call(
        _gen2d_kernel,
        out_shape=jax.ShapeDtypeStruct((R, Cout), out_dtype),
        grid=grid,
        in_specs=[
            pl.BlockSpec((2, Chp), lambda i: (0, 0)),    # resident constant table
            pl.BlockSpec((tn, 2), lambda i: (i, 0)),
        ],
        out_specs=pl.BlockSpec((tn, Cout), lambda i: (i, 0)),
        compiler_params=pltpu.CompilerParams(
            dimension_semantics=("parallel",)),
        cost_estimate=pl.CostEstimate(
            flops=2 * R * Cout,
            transcendentals=R * Cout,
            bytes_accessed=R * Cout * jnp.dtype(out_dtype).itemsize
            + R * 2 * 4 + 2 * Chp * 4),
    )(coeffs, coord2)

    if pad:
        # Drop padded lanes of each half (only for non-128-multiple widths).
        out = jnp.concatenate(
            [out[:, :num_feat], out[:, Chp:Chp + num_feat]], axis=-1)
    return out.reshape(B, N, 2 * num_feat)


def _reference(coord, width=256, temperature=10000):
    """Pure-JAX mirror of the PyTorch forward, used for correctness checking."""
    B, N, _ = coord.shape
    num_feat = width // 2
    coordx = coord[:, :, 0:1]
    coordy = coord[:, :, 1:2]
    dim_t = jnp.arange(num_feat, dtype=jnp.float32)
    dim_t = temperature ** (2 * (dim_t // 2) / num_feat)
    cx = coordx / dim_t
    cy = coordy / dim_t
    cx = jnp.stack((jnp.sin(cx[:, :, 0::2]), jnp.cos(cx[:, :, 1::2])),
                   axis=3).reshape(B, N, -1)
    cy = jnp.stack((jnp.sin(cy[:, :, 0::2]), jnp.cos(cy[:, :, 1::2])),
                   axis=3).reshape(B, N, -1)
    return jnp.concatenate((cy, cx), axis=2)


if __name__ == "__main__":
    key = jax.random.PRNGKey(0)
    # Mean-shape coordinates: (Batch, Number, Dim) as the module expects.
    B, N, D = 2, 16, 2
    width = 256          # module default -> output channels = 256
    temperature = 10000

    coord = jax.random.normal(key, (B, N, D), dtype=jnp.float32)

    pos = gen_2d_embedding_from_vector(coord, width=width, temperature=temperature)
    pos = jax.block_until_ready(pos)

    ref = _reference(coord, width=width, temperature=temperature)
    assert pos.shape == (B, N, width), pos.shape
    assert pos.dtype == jnp.float32
    assert jnp.allclose(pos, ref, atol=1e-5, rtol=1e-5), "mismatch vs reference"

    print("KERNEL_OK")
</pallas_src>

<mosaic_0001>
module attributes {stable_mosaic.version = 11 : i64} {
  func.func @_gen2d_kernel(%arg0: i32, %arg1: memref<2x128xf32, #tpu.memory_space<vmem>>, %arg2: memref<16x2xf32, #tpu.memory_space<vmem>>, %arg3: memref<16x256xf32, #tpu.memory_space<vmem>>) attributes {dimension_semantics = [#tpu.dimension_semantics<parallel>], iteration_bounds = array<i64: 2>, scalar_prefetch = 0 : i64, scratch_operands = 0 : i64, tpu.core_type = #tpu.core_type<tc>, window_params = [{pipeline_mode = #tpu.pipeline_mode<synchronous>, transform_indices = @transform_0, window_bounds = array<i64: 2, 128>}, {transform_indices = @transform_1, window_bounds = array<i64: 16, 2>}, {transform_indices = @transform_2, window_bounds = array<i64: 16, 256>}]} {
    %c0 = arith.constant 0 : index
    %c0_0 = arith.constant 0 : index
    %0 = vector.load %arg1[%c0, %c0_0] : memref<2x128xf32, #tpu.memory_space<vmem>>, vector<1x128xf32>
    %c1 = arith.constant 1 : index
    %c0_1 = arith.constant 0 : index
    %1 = vector.load %arg1[%c1, %c0_1] : memref<2x128xf32, #tpu.memory_space<vmem>>, vector<1x128xf32>
    %c0_2 = arith.constant 0 : index
    %c0_3 = arith.constant 0 : index
    %2 = vector.load %arg2[%c0_2, %c0_3] : memref<16x2xf32, #tpu.memory_space<vmem>>, vector<16x1xf32>
    %c0_4 = arith.constant 0 : index
    %c1_5 = arith.constant 1 : index
    %3 = vector.load %arg2[%c0_4, %c1_5] : memref<16x2xf32, #tpu.memory_space<vmem>>, vector<16x1xf32>
    %4 = vector.broadcast %3 : vector<16x1xf32> to vector<16x128xf32>
    %5 = vector.broadcast %0 : vector<1x128xf32> to vector<16x128xf32>
    %6 = arith.mulf %4, %5 : vector<16x128xf32>
    %7 = vector.broadcast %1 : vector<1x128xf32> to vector<16x128xf32>
    %8 = arith.addf %6, %7 : vector<16x128xf32>
    %9 = math.sin %8 : vector<16x128xf32>
    %c0_6 = arith.constant 0 : index
    %c0_7 = arith.constant 0 : index
    %10 = vector.load %arg3[%c0_6, %c0_7] : memref<16x256xf32, #tpu.memory_space<vmem>>, vector<16x128xf32>
    tpu.vector_store %arg3[%c0_6, %c0_7], %9 {strides = array<i32>} : memref<16x256xf32, #tpu.memory_space<vmem>>, vector<16x128xf32>,
    %11 = vector.broadcast %2 : vector<16x1xf32> to vector<16x128xf32>
    %12 = vector.broadcast %0 : vector<1x128xf32> to vector<16x128xf32>
    %13 = arith.mulf %11, %12 : vector<16x128xf32>
    %14 = vector.broadcast %1 : vector<1x128xf32> to vector<16x128xf32>
    %15 = arith.addf %13, %14 : vector<16x128xf32>
    %16 = math.sin %15 : vector<16x128xf32>
    %c0_8 = arith.constant 0 : index
    %c128 = arith.constant 128 : index
    %17 = vector.load %arg3[%c0_8, %c128] : memref<16x256xf32, #tpu.memory_space<vmem>>, vector<16x128xf32>
    tpu.vector_store %arg3[%c0_8, %c128], %16 {strides = array<i32>} : memref<16x256xf32, #tpu.memory_space<vmem>>, vector<16x128xf32>,
    return
  }
  func.func @transform_0(%arg0: i32) -> (i32, i32) {
    %c0_i32 = arith.constant 0 : i32
    %c0_i32_0 = arith.constant 0 : i32
    %c0_i32_1 = arith.constant 0 : i32
    return %c0_i32, %c0_i32_0 : i32, i32
  }
  func.func @transform_1(%arg0: i32) -> (i32, i32) {
    %c0_i32 = arith.constant 0 : i32
    %c0_i32_0 = arith.constant 0 : i32
    return %arg0, %c0_i32 : i32, i32
  }
  func.func @transform_2(%arg0: i32) -> (i32, i32) {
    %c0_i32 = arith.constant 0 : i32
    %c0_i32_0 = arith.constant 0 : i32
    return %arg0, %c0_i32 : i32, i32
  }
}

</mosaic_0001>

<llo_original>
// kernel: tpu_custom_call.1
$region0: #{tpu_custom_call.1}
  #allocation0 [shape = 'u32[]', space=smem, size = 0x4, offset = 0x4, fixed_abs, tag = 'smem constant byte address 0x4 - core index']
  #allocation1 [shape = 'u32[144,128]{1,0:T(1,128)}', space=vmem, size = 0x12000, scoped, tag = 'internal scratch']
  %s0 = inlined_call_operand.vmem [shape: f32[2,128], index: 0, kind: input, shape index: {}]
  %s1 = inlined_call_operand.vmem [shape: f32[32,2], index: 1, kind: input, shape index: {}]
  %s2 = inlined_call_operand.hbm [shape: f32[32,256], index: 2, kind: output, shape index: {}]
  %s3 = sld [smem:[#allocation0]]
  $region41: #{tpu_custom_call.1} parent=0
    _
  %s5 = ssub.s32 1, %s3
  %s6 = scalar_select 0, %s5, %s3
  $region1: #{tpu_custom_call.1} parent=0
    #allocation2 [shape = 'u8[32768]{0}', space=vmem, size = 0x8000, scoped, tag = 'output window, operand 0']
    #allocation3 [shape = 's32[2]{0}', space=sflag, size = 0x8, scoped, tag = 'scoped memory for tpu_custom_call.1']
    %7 = vsyncpa [#allocation3], 0
    %s8 = scalar_lea.sflag [#allocation3], 1
    %9 = vsyncpa %s8, 0
    loop: start=0, step=1, limit=4
    $region2: #{tpu_custom_call.1} parent=1 // loop_pre_header
      _
    $region3: #{tpu_custom_call.1} parent=1 // loop_header
      %s11 = sphi 0, %s15
      %p12 = scmp.ge.s32.totalorder %s11, 4
      %s19 = sphi 0, %s19
      %s21 = sphi 0, %s19
      %s22 = sphi 0, %s21
      %s36 = sphi 0, %s22
      %s42 = sphi 0, %s44
      %s45 = sphi 0, %s42
      %s46 = sphi 0, %s45
      %s62 = sphi 0, %s46
      %s68 = sphi 0, %s70
      %s71 = sphi 0, %s68
      %s72 = sphi 0, %s71
      %s88 = sphi 0, %s72
    $region4: #{tpu_custom_call.1} parent=1 // loop_header_branch
      %14 = sbr.rel (%p12) target = $region8
    $region5: #{tpu_custom_call.1} parent=1 // loop_body
      %s16 = ssub.s32 %s11, 1
      %s17 = ssub.s32 %s11, 2
      %s18 = sadd.s32 %s11, 1
      %s20 = sadd.s32 %s19, 1
      %p23 = scmp.eq.s32.totalorder %s11, 1
      %p24 = scmp.ne.s32.totalorder %s19, %s21
      %p25 = scmp.eq.s32.totalorder %s11, 0
      %p26 = por %p24, %p25
      %p27 = scmp.ne.s32.totalorder %s19, %s21
      %p28 = scmp.eq.s32.totalorder %s16, 1
      %p29 = por %p27, %p28
      %p30 = scmp.ne.s32.totalorder %s21, %s22
      %p31 = scmp.eq.s32.totalorder %s16, 0
      %p32 = por %p30, %p31
      %p33 = scmp.ne.s32.totalorder %s21, %s22
      %p34 = scmp.eq.s32.totalorder %s17, 1
      %p35 = por %p33, %p34
      %p37 = scmp.ne.s32.totalorder %s22, %s36
      %p38 = scmp.eq.s32.totalorder %s17, 0
      %p39 = por %p37, %p38
      %s40 = ssub.s32 %s11, %s18
      %p41 = scmp.eq.s32.totalorder %s40, 0
      %s43 = sadd.s32 %s42, 1
      %s44 = scalar_select %p41, %s42, %s43
      %p47 = pneg %p41
      %p48 = scmp.eq.s32.totalorder %s11, 1
      %p49 = por %p47, %p48
      %p50 = scmp.ne.s32.totalorder %s42, %s45
      %p51 = scmp.eq.s32.totalorder %s11, 0
      %p52 = por %p50, %p51
      %p53 = scmp.ne.s32.totalorder %s42, %s45
      %p54 = scmp.eq.s32.totalorder %s16, 1
      %p55 = por %p53, %p54
      %p56 = scmp.ne.s32.totalorder %s45, %s46
      %p57 = scmp.eq.s32.totalorder %s16, 0
      %p58 = por %p56, %p57
      %p59 = scmp.ne.s32.totalorder %s45, %s46
      %p60 = scmp.eq.s32.totalorder %s17, 1
      %p61 = por %p59, %p60
      %p63 = scmp.ne.s32.totalorder %s46, %s62
      %p64 = scmp.eq.s32.totalorder %s17, 0
      %p65 = por %p63, %p64
      %s66 = ssub.s32 %s11, %s18
      %p67 = scmp.eq.s32.totalorder %s66, 0
      %s69 = sadd.s32 %s68, 1
      %s70 = scalar_select %p67, %s68, %s69
      %p73 = pneg %p67
      %p74 = scmp.eq.s32.totalorder %s11, 1
      %p75 = por %p73, %p74
      %p76 = scmp.ne.s32.totalorder %s68, %s71
      %p77 = scmp.eq.s32.totalorder %s11, 0
      %p78 = por %p76, %p77
      %p79 = scmp.ne.s32.totalorder %s68, %s71
      %p80 = scmp.eq.s32.totalorder %s16, 1
      %p81 = por %p79, %p80
      %p82 = scmp.ne.s32.totalorder %s71, %s72
      %p83 = scmp.eq.s32.totalorder %s16, 0
      %p84 = por %p82, %p83
      %p85 = scmp.ne.s32.totalorder %s71, %s72
      %p86 = scmp.eq.s32.totalorder %s17, 1
      %p87 = por %p85, %p86
      %p89 = scmp.ne.s32.totalorder %s72, %s88
      %p90 = scmp.eq.s32.totalorder %s17, 0
      %p91 = por %p89, %p90
      %p92 = scmp.le.s32.totalorder 1, %s11
      %p93 = scmp.lt.s32.totalorder %s11, 3
      %p94 = pnand %p92, %p93
      %p95 = pneg %p94
      // Predicated region
      $region9: #{tpu_custom_call.1} parent=5 // pred_check
        _
      $region10: #{tpu_custom_call.1} parent=5 // pred_check_branch
        %97 = sbr.rel (%p94) target = $region12
      $region11: #{tpu_custom_call.1} parent=5 // pred_region
        %s98 = ssub.s32 %s11, 1
        // Predicated region
        $region13: #{tpu_custom_call.1} parent=11 // pred_check
          %p99 = pneg %p32
        $region14: #{tpu_custom_call.1} parent=11 // pred_check_branch
          %101 = sbr.rel (%p99) target = $region16
        $region15: #{tpu_custom_call.1} parent=11 // pred_region
          _
        $region16: #{tpu_custom_call.1} parent=11 // pred_fallthru
          _
      $region12: #{tpu_custom_call.1} parent=5 // pred_fallthru
        _
      %p102 = scmp.lt.s32.totalorder %s11, 2
      // Predicated region
      $region17: #{tpu_custom_call.1} parent=5 // pred_check
        %p103 = pneg %p102
      $region18: #{tpu_custom_call.1} parent=5 // pred_check_branch
        %105 = sbr.rel (%p103) target = $region20
      $region19: #{tpu_custom_call.1} parent=5 // pred_region
        // Predicated region
        $region21: #{tpu_custom_call.1} parent=19 // pred_check
          %p106 = pneg %p52
        $region22: #{tpu_custom_call.1} parent=19 // pred_check_branch
          %108 = sbr.rel (%p106) target = $region24
        $region23: #{tpu_custom_call.1} parent=19 // pred_region
          %s109 = smul.u32 2, %s11
          %p110 = scmp.lt.s32.totalorder %s109, 3
          %s111 = scalar_select %p110, %s109, 3
          %s112 = smul.addr %s111, 8
          %s113 = scalar_lea.vmem %s1, %s112
          %s114 = smul.u32 2, %s11
        $region24: #{tpu_custom_call.1} parent=19 // pred_fallthru
          _
      $region20: #{tpu_custom_call.1} parent=5 // pred_fallthru
        _
      %p115 = scmp.le.s32.totalorder 1, %s11
      %p116 = scmp.lt.s32.totalorder %s11, 3
      %p117 = pnand %p115, %p116
      %p118 = pneg %p117
      // Predicated region
      $region25: #{tpu_custom_call.1} parent=5 // pred_check
        _
      $region26: #{tpu_custom_call.1} parent=5 // pred_check_branch
        %120 = sbr.rel (%p117) target = $region28
      $region27: #{tpu_custom_call.1} parent=5 // pred_region
        %s121 = ssub.s32 %s11, 1
        %p122 = pneg %p32
        %p123 = pneg %p29
        %s124 = smul.u32 2, %s16
        %p125 = scmp.lt.s32.totalorder %s124, 3
        %s126 = scalar_select %p125, %s124, 3
        %s127 = smul.addr %s126, 8
        %s128 = scalar_lea.vmem %s1, %s127
        %p129 = pneg %p58
        %p130 = pneg %p55
        %p131 = pneg %p84
        %p132 = pneg %p81
        %s133 = sand.u32 %s71, 1
        %s134 = scalar_lea.sflag [#allocation3], %s133
        %s135 = sand.u32 %s71, 1
        %s136 = smul.addr %s135, 32
        %s137 = scalar_lea.vmem [#allocation2], %s136
        %s138 = smul.u32 2, %s16
        %p139 = scmp.lt.s32.totalorder %s138, 3
        %s140 = scalar_select %p139, %s138, 3
        %s141 = smul.addr %s140, 8
        %s142 = scalar_lea.vmem %s1, %s141
        %s143 = smul.u32 2, %s16
        %s144 = smul.u32 2, %s16
        %v145 = vld [vmem:[%s0] sm:$0x1]
        %v146 = vld [vmem:[%s0 + $0x1] sm:$0x1]
        %v147 = vld [vmem:[%s142] sm:$0xff]
        %v148 = vld [vmem:[%s142 + $0x8] sm:$0xff]
        %150 = vset.pattern.permute.xlu0 1
        %151 = vperm.xlu0 %150, %v147
        %v152 = vpop.permute.xlu0 %151
        %155 = vset.pattern.permute.xlu0 1
        %156 = vperm.xlu0 %155, %v148
        %v157 = vpop.permute.xlu0 %156
        %v159 = vlaneseq
        %v160 = vshrl.u32 %v159, 7
        %v161 = vsub.s32 0, %v160
        %v162 = vrot.slane %v145, %v161
        %v163 = vmul.f32 %v152, %v162
        %v164 = vmul.f32 %v157, %v162
        %v165 = vlaneseq
        %v166 = vshrl.u32 %v165, 7
        %v167 = vsub.s32 0, %v166
        %v168 = vrot.slane %v146, %v167
        %v169 = vadd.f32 %v163, %v168
        %v170 = vadd.f32 %v164, %v168
        %v171 = vand.u32 2147483647, %v169
        %vm172 = vcmp.le.f32.partialorder %v171, 0.7853982
        %vm173 = vcmp.lt.s32.totalorder %v169, 0
        %v174 = vand.u32 %v169, 2139095040
        %v175 = vshrl.u32 %v174, 23
        %v176 = vsub.s32 %v175, 127
        %v177 = vand.u32 2147483647, %v169
        %v178 = vand.u32 %v177, 8388607
        %v179 = vor.u32 %v178, 8388608
        %v180 = vsub.s32 0, %v179
        %v181 = vadd.s32 %v176, 1
        %vm182 = vcmp.gt.s32.totalorder %v181, 0
        %v183 = vsel %vm182, %v181, 0
        %v184 = vshrl.u32 %v183, 5
        %v185 = vand.u32 %v183, 31
        %v186 = vsub.s32 32, %v185
        %v187 = vshrl.u32 683565275, %v186
        %v188 = vshll.u32 683565275, %v185
        %v189 = vshrl.u32 2475754826, %v186
        %v190 = vor.u32 %v188, %v189
        %v191 = vshll.u32 2475754826, %v185
        %v192 = vshrl.u32 2131351028, %v186
        %v193 = vor.u32 %v191, %v192
        %v194 = vshll.u32 2131351028, %v185
        %v195 = vshrl.u32 2102212464, %v186
        %v196 = vor.u32 %v194, %v195
        %v197 = vshll.u32 2102212464, %v185
        %v198 = vshrl.u32 920167782, %v186
        %v199 = vor.u32 %v197, %v198
        %v200 = vshll.u32 920167782, %v185
        %v201 = vshrl.u32 1326507024, %v186
        %v202 = vor.u32 %v200, %v201
        %vm203 = vcmp.lt.s32.totalorder %v184, 1
        %vm204 = vcmp.lt.s32.totalorder %v184, 2
        %vm205 = vcmp.lt.s32.totalorder %v184, 3
        %vm206 = vcmp.lt.s32.totalorder %v184, 4
        %v207 = vsel %vm203, %v187, %v190
        %v208 = vsel %vm206, %v196, 2102212464
        %v209 = vsel %vm205, %v193, %v208
        %v210 = vsel %vm204, %v207, %v209
        %v211 = vsel %vm203, %v190, %v193
        %v212 = vsel %vm206, %v199, 920167782
        %v213 = vsel %vm205, %v196, %v212
        %v214 = vsel %vm204, %v211, %v213
        %v215 = vsel %vm203, %v193, %v196
        %v216 = vsel %vm206, %v202, 1326507024
        %v217 = vsel %vm205, %v199, %v216
        %v218 = vsel %vm204, %v215, %v217
        %v219 = vshll.u32 %v179, 8
        %v220 = vmul.u32.u64.compose %v219, %v218
        %v221 = vextract.low.u32 %v220
        %v222 = vextract.high.u32 %v220
        %v223 = vmul.u32.u64.compose %v219, %v214
        %v224 = vextract.low.u32 %v223
        %v225 = vextract.high.u32 %v223
        %v226 = vmul.u32 %v219, %v210
        %v227 = vadd.s32 %v222, %v224
        %vm228 = vc.u32 %v222, %v224
        %v229 = vadd.s32 %v225, 1
        %v230 = vsel %vm228, %v229, %v225
        %v231 = vadd.s32 %v226, %v230
        %v232 = vadd.s32 %v231, 536870912
        %v233 = vshrl.u32 %v232, 30
        %v234 = vshll.u32 %v233, 30
        %v235 = vsub.s32 %v231, %v234
        %vm236 = vcmp.lt.s32.totalorder %v235, 0
        %v237 = vsub.s32 0, %v235
        %v238 = vsel %vm236, %v237, %v235
        %v239 = vclz %v238
        %v240 = vsub.s32 %v239, 2
        %vm241 = vcmp.gt.s32.totalorder 0, %v240
        %v242 = vsel %vm241, 0, %v240
        %v243 = vsub.s32 32, %v242
        %v244 = vshll.u32 %v235, %v242
        %v245 = vshrl.u32 %v227, %v243
        %v246 = vor.u32 %v244, %v245
        %v247 = vsub.s32 4294967266, %v242
        %v248 = vadd.s32 %v247, 127
        %v249 = vshll.u32 %v248, 23
        %v250 = vor.u32 4788187, %v249
        %v251 = vand.u32 2147483647, %v250
        %v253 = vcvt.s32.f32 %v246
        %v254 = vmul.f32 %v253, %v251
        %v255 = vxor.u32 %v254, 2147483648
        %v256 = vsel %vm173, %v255, %v254
        %v257 = vsub.s32 4, %v233
        %v258 = vsel %vm173, %v257, %v233
        %v259 = vsel %vm172, %v169, %v256
        %v260 = vsel %vm172, 0, %v258
        %v261 = vcosq.f32.pop %v259
        %v262 = vsinq.f32.pop %v259
        %vm263 = vweird.f32 %v169
        %v264 = vadd.s32 %v260, 3
        %v265 = vand.u32 %v264, 3
        %vm266 = vcmp.lt.s32.totalorder %v265, 2
        %vm267 = vcmp.eq.s32.totalorder %v265, 0
        %v268 = vxor.u32 %v262, 2147483648
        %v269 = vsel %vm267, %v261, %v268
        %vm270 = vcmp.eq.s32.totalorder %v265, 2
        %v271 = vxor.u32 %v261, 2147483648
        %v272 = vsel %vm270, %v271, %v262
        %v273 = vsel %vm266, %v269, %v272
        %v274 = vsel %vm263, nan, %v273
        %v275 = vand.u32 2147483647, %v170
        %vm276 = vcmp.le.f32.partialorder %v275, 0.7853982
        %vm277 = vcmp.lt.s32.totalorder %v170, 0
        %v278 = vand.u32 %v170, 2139095040
        %v279 = vshrl.u32 %v278, 23
        %v280 = vsub.s32 %v279, 127
        %v281 = vand.u32 2147483647, %v170
        %v282 = vand.u32 %v281, 8388607
        %v283 = vor.u32 %v282, 8388608
        %v284 = vsub.s32 0, %v283
        %v285 = vadd.s32 %v280, 1
        %vm286 = vcmp.gt.s32.totalorder %v285, 0
        %v287 = vsel %vm286, %v285, 0
        %v288 = vshrl.u32 %v287, 5
        %v289 = vand.u32 %v287, 31
        %v290 = vsub.s32 32, %v289
        %v291 = vshrl.u32 683565275, %v290
        %v292 = vshll.u32 683565275, %v289
        %v293 = vshrl.u32 2475754826, %v290
        %v294 = vor.u32 %v292, %v293
        %v295 = vshll.u32 2475754826, %v289
        %v296 = vshrl.u32 2131351028, %v290
        %v297 = vor.u32 %v295, %v296
        %v298 = vshll.u32 2131351028, %v289
        %v299 = vshrl.u32 2102212464, %v290
        %v300 = vor.u32 %v298, %v299
        %v301 = vshll.u32 2102212464, %v289
        %v302 = vshrl.u32 920167782, %v290
        %v303 = vor.u32 %v301, %v302
        %v304 = vshll.u32 920167782, %v289
        %v305 = vshrl.u32 1326507024, %v290
        %v306 = vor.u32 %v304, %v305
        %vm307 = vcmp.lt.s32.totalorder %v288, 1
        %vm308 = vcmp.lt.s32.totalorder %v288, 2
        %vm309 = vcmp.lt.s32.totalorder %v288, 3
        %vm310 = vcmp.lt.s32.totalorder %v288, 4
        %v311 = vsel %vm307, %v291, %v294
        %v312 = vsel %vm310, %v300, 2102212464
        %v313 = vsel %vm309, %v297, %v312
        %v314 = vsel %vm308, %v311, %v313
        %v315 = vsel %vm307, %v294, %v297
        %v316 = vsel %vm310, %v303, 920167782
        %v317 = vsel %vm309, %v300, %v316
        %v318 = vsel %vm308, %v315, %v317
        %v319 = vsel %vm307, %v297, %v300
        %v320 = vsel %vm310, %v306, 1326507024
        %v321 = vsel %vm309, %v303, %v320
        %v322 = vsel %vm308, %v319, %v321
        %v323 = vshll.u32 %v283, 8
        %v324 = vmul.u32.u64.compose %v323, %v322
        %v325 = vextract.low.u32 %v324
        %v326 = vextract.high.u32 %v324
        %v327 = vmul.u32.u64.compose %v323, %v318
        %v328 = vextract.low.u32 %v327
        %v329 = vextract.high.u32 %v327
        %v330 = vmul.u32 %v323, %v314
        %v331 = vadd.s32 %v326, %v328
        %vm332 = vc.u32 %v326, %v328
        %v333 = vadd.s32 %v329, 1
        %v334 = vsel %vm332, %v333, %v329
        %v335 = vadd.s32 %v330, %v334
        %v336 = vadd.s32 %v335, 536870912
        %v337 = vshrl.u32 %v336, 30
        %v338 = vshll.u32 %v337, 30
        %v339 = vsub.s32 %v335, %v338
        %vm340 = vcmp.lt.s32.totalorder %v339, 0
        %v341 = vsub.s32 0, %v339
        %v342 = vsel %vm340, %v341, %v339
        %v343 = vclz %v342
        %v344 = vsub.s32 %v343, 2
        %vm345 = vcmp.gt.s32.totalorder 0, %v344
        %v346 = vsel %vm345, 0, %v344
        %v347 = vsub.s32 32, %v346
        %v348 = vshll.u32 %v339, %v346
        %v349 = vshrl.u32 %v331, %v347
        %v350 = vor.u32 %v348, %v349
        %v351 = vsub.s32 4294967266, %v346
        %v352 = vadd.s32 %v351, 127
        %v353 = vshll.u32 %v352, 23
        %v354 = vor.u32 4788187, %v353
        %v355 = vand.u32 2147483647, %v354
        %v357 = vcvt.s32.f32 %v350
        %v358 = vmul.f32 %v357, %v355
        %v359 = vxor.u32 %v358, 2147483648
        %v360 = vsel %vm277, %v359, %v358
        %v361 = vsub.s32 4, %v337
        %v362 = vsel %vm277, %v361, %v337
        %v363 = vsel %vm276, %v170, %v360
        %v364 = vsel %vm276, 0, %v362
        %v365 = vcosq.f32.pop %v363
        %v366 = vsinq.f32.pop %v363
        %vm367 = vweird.f32 %v170
        %v368 = vadd.s32 %v364, 3
        %v369 = vand.u32 %v368, 3
        %vm370 = vcmp.lt.s32.totalorder %v369, 2
        %vm371 = vcmp.eq.s32.totalorder %v369, 0
        %v372 = vxor.u32 %v366, 2147483648
        %v373 = vsel %vm371, %v365, %v372
        %vm374 = vcmp.eq.s32.totalorder %v369, 2
        %v375 = vxor.u32 %v365, 2147483648
        %v376 = vsel %vm374, %v375, %v366
        %v377 = vsel %vm370, %v373, %v376
        %v378 = vsel %vm367, nan, %v377
        %379 = vst [vmem:[%s137] sm:$0xff] %v274
        %380 = vst [vmem:[%s137 + $0x10] sm:$0xff] %v378
        %381 = vset.pattern.permute.xlu0 0
        %382 = vperm.xlu0 %381, %v147
        %v383 = vpop.permute.xlu0 %382
        %385 = vset.pattern.permute.xlu0 0
        %386 = vperm.xlu0 %385, %v148
        %v387 = vpop.permute.xlu0 %386
        %v389 = vmul.f32 %v383, %v162
        %v390 = vmul.f32 %v387, %v162
        %v391 = vadd.f32 %v389, %v168
        %v392 = vadd.f32 %v390, %v168
        %v393 = vand.u32 2147483647, %v391
        %vm394 = vcmp.le.f32.partialorder %v393, 0.7853982
        %vm395 = vcmp.lt.s32.totalorder %v391, 0
        %v396 = vand.u32 %v391, 2139095040
        %v397 = vshrl.u32 %v396, 23
        %v398 = vsub.s32 %v397, 127
        %v399 = vand.u32 2147483647, %v391
        %v400 = vand.u32 %v399, 8388607
        %v401 = vor.u32 %v400, 8388608
        %v402 = vsub.s32 0, %v401
        %v403 = vadd.s32 %v398, 1
        %vm404 = vcmp.gt.s32.totalorder %v403, 0
        %v405 = vsel %vm404, %v403, 0
        %v406 = vshrl.u32 %v405, 5
        %v407 = vand.u32 %v405, 31
        %v408 = vsub.s32 32, %v407
        %v409 = vshrl.u32 683565275, %v408
        %v410 = vshll.u32 683565275, %v407
        %v411 = vshrl.u32 2475754826, %v408
        %v412 = vor.u32 %v410, %v411
        %v413 = vshll.u32 2475754826, %v407
        %v414 = vshrl.u32 2131351028, %v408
        %v415 = vor.u32 %v413, %v414
        %v416 = vshll.u32 2131351028, %v407
        %v417 = vshrl.u32 2102212464, %v408
        %v418 = vor.u32 %v416, %v417
        %v419 = vshll.u32 2102212464, %v407
        %v420 = vshrl.u32 920167782, %v408
        %v421 = vor.u32 %v419, %v420
        %v422 = vshll.u32 920167782, %v407
        %v423 = vshrl.u32 1326507024, %v408
        %v424 = vor.u32 %v422, %v423
        %vm425 = vcmp.lt.s32.totalorder %v406, 1
        %vm426 = vcmp.lt.s32.totalorder %v406, 2
        %vm427 = vcmp.lt.s32.totalorder %v406, 3
        %vm428 = vcmp.lt.s32.totalorder %v406, 4
        %v429 = vsel %vm425, %v409, %v412
        %v430 = vsel %vm428, %v418, 2102212464
        %v431 = vsel %vm427, %v415, %v430
        %v432 = vsel %vm426, %v429, %v431
        %v433 = vsel %vm425, %v412, %v415
        %v434 = vsel %vm428, %v421, 920167782
        %v435 = vsel %vm427, %v418, %v434
        %v436 = vsel %vm426, %v433, %v435
        %v437 = vsel %vm425, %v415, %v418
        %v438 = vsel %vm428, %v424, 1326507024
        %v439 = vsel %vm427, %v421, %v438
        %v440 = vsel %vm426, %v437, %v439
        %v441 = vshll.u32 %v401, 8
        %v442 = vmul.u32.u64.compose %v441, %v440
        %v443 = vextract.low.u32 %v442
        %v444 = vextract.high.u32 %v442
        %v445 = vmul.u32.u64.compose %v441, %v436
        %v446 = vextract.low.u32 %v445
        %v447 = vextract.high.u32 %v445
        %v448 = vmul.u32 %v441, %v432
        %v449 = vadd.s32 %v444, %v446
        %vm450 = vc.u32 %v444, %v446
        %v451 = vadd.s32 %v447, 1
        %v452 = vsel %vm450, %v451, %v447
        %v453 = vadd.s32 %v448, %v452
        %v454 = vadd.s32 %v453, 536870912
        %v455 = vshrl.u32 %v454, 30
        %v456 = vshll.u32 %v455, 30
        %v457 = vsub.s32 %v453, %v456
        %vm458 = vcmp.lt.s32.totalorder %v457, 0
        %v459 = vsub.s32 0, %v457
        %v460 = vsel %vm458, %v459, %v457
        %v461 = vclz %v460
        %v462 = vsub.s32 %v461, 2
        %vm463 = vcmp.gt.s32.totalorder 0, %v462
        %v464 = vsel %vm463, 0, %v462
        %v465 = vsub.s32 32, %v464
        %v466 = vshll.u32 %v457, %v464
        %v467 = vshrl.u32 %v449, %v465
        %v468 = vor.u32 %v466, %v467
        %v469 = vsub.s32 4294967266, %v464
        %v470 = vadd.s32 %v469, 127
        %v471 = vshll.u32 %v470, 23
        %v472 = vor.u32 4788187, %v471
        %v473 = vand.u32 2147483647, %v472
        %v475 = vcvt.s32.f32 %v468
        %v476 = vmul.f32 %v475, %v473
        %v477 = vxor.u32 %v476, 2147483648
        %v478 = vsel %vm395, %v477, %v476
        %v479 = vsub.s32 4, %v455
        %v480 = vsel %vm395, %v479, %v455
        %v481 = vsel %vm394, %v391, %v478
        %v482 = vsel %vm394, 0, %v480
        %v483 = vcosq.f32.pop %v481
        %v484 = vsinq.f32.pop %v481
        %vm485 = vweird.f32 %v391
        %v486 = vadd.s32 %v482, 3
        %v487 = vand.u32 %v486, 3
        %vm488 = vcmp.lt.s32.totalorder %v487, 2
        %vm489 = vcmp.eq.s32.totalorder %v487, 0
        %v490 = vxor.u32 %v484, 2147483648
        %v491 = vsel %vm489, %v483, %v490
        %vm492 = vcmp.eq.s32.totalorder %v487, 2
        %v493 = vxor.u32 %v483, 2147483648
        %v494 = vsel %vm492, %v493, %v484
        %v495 = vsel %vm488, %v491, %v494
        %v496 = vsel %vm485, nan, %v495
        %v497 = vand.u32 2147483647, %v392
        %vm498 = vcmp.le.f32.partialorder %v497, 0.7853982
        %vm499 = vcmp.lt.s32.totalorder %v392, 0
        %v500 = vand.u32 %v392, 2139095040
        %v501 = vshrl.u32 %v500, 23
        %v502 = vsub.s32 %v501, 127
        %v503 = vand.u32 2147483647, %v392
        %v504 = vand.u32 %v503, 8388607
        %v505 = vor.u32 %v504, 8388608
        %v506 = vsub.s32 0, %v505
        %v507 = vadd.s32 %v502, 1
        %vm508 = vcmp.gt.s32.totalorder %v507, 0
        %v509 = vsel %vm508, %v507, 0
        %v510 = vshrl.u32 %v509, 5
        %v511 = vand.u32 %v509, 31
        %v512 = vsub.s32 32, %v511
        %v513 = vshrl.u32 683565275, %v512
        %v514 = vshll.u32 683565275, %v511
        %v515 = vshrl.u32 2475754826, %v512
        %v516 = vor.u32 %v514, %v515
        %v517 = vshll.u32 2475754826, %v511
        %v518 = vshrl.u32 2131351028, %v512
        %v519 = vor.u32 %v517, %v518
        %v520 = vshll.u32 2131351028, %v511
        %v521 = vshrl.u32 2102212464, %v512
        %v522 = vor.u32 %v520, %v521
        %v523 = vshll.u32 2102212464, %v511
        %v524 = vshrl.u32 920167782, %v512
        %v525 = vor.u32 %v523, %v524
        %v526 = vshll.u32 920167782, %v511
        %v527 = vshrl.u32 1326507024, %v512
        %v528 = vor.u32 %v526, %v527
        %vm529 = vcmp.lt.s32.totalorder %v510, 1
        %vm530 = vcmp.lt.s32.totalorder %v510, 2
        %vm531 = vcmp.lt.s32.totalorder %v510, 3
        %vm532 = vcmp.lt.s32.totalorder %v510, 4
        %v533 = vsel %vm529, %v513, %v516
        %v534 = vsel %vm532, %v522, 2102212464
        %v535 = vsel %vm531, %v519, %v534
        %v536 = vsel %vm530, %v533, %v535
        %v537 = vsel %vm529, %v516, %v519
        %v538 = vsel %vm532, %v525, 920167782
        %v539 = vsel %vm531, %v522, %v538
        %v540 = vsel %vm530, %v537, %v539
        %v541 = vsel %vm529, %v519, %v522
        %v542 = vsel %vm532, %v528, 1326507024
        %v543 = vsel %vm531, %v525, %v542
        %v544 = vsel %vm530, %v541, %v543
        %v545 = vshll.u32 %v505, 8
        %v546 = vmul.u32.u64.compose %v545, %v544
        %v547 = vextract.low.u32 %v546
        %v548 = vextract.high.u32 %v546
        %v549 = vmul.u32.u64.compose %v545, %v540
        %v550 = vextract.low.u32 %v549
        %v551 = vextract.high.u32 %v549
        %v552 = vmul.u32 %v545, %v536
        %v553 = vadd.s32 %v548, %v550
        %vm554 = vc.u32 %v548, %v550
        %v555 = vadd.s32 %v551, 1
        %v556 = vsel %vm554, %v555, %v551
        %v557 = vadd.s32 %v552, %v556
        %v558 = vadd.s32 %v557, 536870912
        %v559 = vshrl.u32 %v558, 30
        %v560 = vshll.u32 %v559, 30
        %v561 = vsub.s32 %v557, %v560
        %vm562 = vcmp.lt.s32.totalorder %v561, 0
        %v563 = vsub.s32 0, %v561
        %v564 = vsel %vm562, %v563, %v561
        %v565 = vclz %v564
        %v566 = vsub.s32 %v565, 2
        %vm567 = vcmp.gt.s32.totalorder 0, %v566
        %v568 = vsel %vm567, 0, %v566
        %v569 = vsub.s32 32, %v568
        %v570 = vshll.u32 %v561, %v568
        %v571 = vshrl.u32 %v553, %v569
        %v572 = vor.u32 %v570, %v571
        %v573 = vsub.s32 4294967266, %v568
        %v574 = vadd.s32 %v573, 127
        %v575 = vshll.u32 %v574, 23
        %v576 = vor.u32 4788187, %v575
        %v577 = vand.u32 2147483647, %v576
        %v579 = vcvt.s32.f32 %v572
        %v580 = vmul.f32 %v579, %v577
        %v581 = vxor.u32 %v580, 2147483648
        %v582 = vsel %vm499, %v581, %v580
        %v583 = vsub.s32 4, %v559
        %v584 = vsel %vm499, %v583, %v559
        %v585 = vsel %vm498, %v392, %v582
        %v586 = vsel %vm498, 0, %v584
        %v587 = vcosq.f32.pop %v585
        %v588 = vsinq.f32.pop %v585
        %vm589 = vweird.f32 %v392
        %v590 = vadd.s32 %v586, 3
        %v591 = vand.u32 %v590, 3
        %vm592 = vcmp.lt.s32.totalorder %v591, 2
        %vm593 = vcmp.eq.s32.totalorder %v591, 0
        %v594 = vxor.u32 %v588, 2147483648
        %v595 = vsel %vm593, %v587, %v594
        %vm596 = vcmp.eq.s32.totalorder %v591, 2
        %v597 = vxor.u32 %v587, 2147483648
        %v598 = vsel %vm596, %v597, %v588
        %v599 = vsel %vm592, %v595, %v598
        %v600 = vsel %vm589, nan, %v599
        %601 = vst [vmem:[%s137 + $0x8] sm:$0xff] %v496
        %602 = vst [vmem:[%s137 + $0x18] sm:$0xff] %v600
        %s603 = sand.u32 %s71, 1
        %s604 = scalar_lea.sflag [#allocation3], %s603
        %s605 = sand.u32 %s71, 1
        %s606 = smul.addr %s605, 32
        %s607 = scalar_lea.vmem [#allocation2], %s606
        // Predicated region
        $region29: #{tpu_custom_call.1} parent=27 // pred_check
          %p608 = pneg %p81
        $region30: #{tpu_custom_call.1} parent=27 // pred_check_branch
          %610 = sbr.rel (%p608) target = $region32
        $region31: #{tpu_custom_call.1} parent=27 // pred_region
          %s611 = smul.u32 2, %s16
          %s613 = ssub.s32 512, 512
          %614 = vsyncadd %s604, %s613
          %s615 = smul.addr %s611, 2
          %s616 = smul.addr %s615, 128
          %s617 = scalar_lea.hbm %s2, %s616
          %s618 = sshll.u32 %s607, 4
          %s619 = int_to_ptr.vmem [resolvable:$true] %s618
          %624 = dma.vmem_to_hbm [thread:$0]  %s619, 512, %s617, %s604, 256, 256, 16
        $region32: #{tpu_custom_call.1} parent=27 // pred_fallthru
          _
      $region28: #{tpu_custom_call.1} parent=5 // pred_fallthru
        _
      %p625 = scmp.le.s32.totalorder 2, %s11
      // Predicated region
      $region33: #{tpu_custom_call.1} parent=5 // pred_check
        %p626 = pneg %p625
      $region34: #{tpu_custom_call.1} parent=5 // pred_check_branch
        %628 = sbr.rel (%p626) target = $region36
      $region35: #{tpu_custom_call.1} parent=5 // pred_region
        %s629 = ssub.s32 %s11, 2
        // Predicated region
        $region37: #{tpu_custom_call.1} parent=35 // pred_check
          %p630 = pneg %p87
        $region38: #{tpu_custom_call.1} parent=35 // pred_check_branch
          %632 = sbr.rel (%p630) target = $region40
        $region39: #{tpu_custom_call.1} parent=35 // pred_region
          %s633 = sand.u32 %s72, 1
          %s634 = scalar_lea.sflag [#allocation3], %s633
          %s635 = sand.u32 %s72, 1
          %s636 = smul.addr %s635, 32
          %s637 = scalar_lea.vmem [#allocation2], %s636
          %638 = dma.done %s634, 512
        $region40: #{tpu_custom_call.1} parent=35 // pred_fallthru
          _
      $region36: #{tpu_custom_call.1} parent=5 // pred_fallthru
        _
    $region6: #{tpu_custom_call.1} parent=1 // loop_footer
      %s15 = sadd.s32 1, %s11
    $region7: #{tpu_custom_call.1} parent=1 // loop_footer_branch
      %10 = sbr.rel target = $region3
    $region8: #{tpu_custom_call.1} parent=1 // loop_exit
      _
    %639 = vsyncpa [#allocation3], 1
    %s640 = scalar_lea.sflag [#allocation3], 1
    %641 = vsyncpa %s640, 1

</llo_original>
